<compile_context>
chip_gen: v7x
topology: tpu7x:2x2x1
jax: 0.10.0
libtpu: 0.0.40
codegen_flags: <defaults>
</compile_context>

<pallas_src>
import numpy as np
import jax
import jax.numpy as jnp
from jax.experimental import pallas as pl
from jax.experimental.pallas import tpu as pltpu

EPS = 1e-5  # nn.LayerNorm default eps


# ----------------------------- kernels ---------------------------------------
def _m_kernel(m_ref, g_ref, b_ref, out_ref):
    x = m_ref[...].astype(jnp.float32)                       # (TM, C_m)
    mu = jnp.mean(x, axis=-1, keepdims=True)
    var = jnp.mean((x - mu) ** 2, axis=-1, keepdims=True)
    out = (x - mu) * jax.lax.rsqrt(var + EPS) * g_ref[...] + b_ref[...]
    out_ref[...] = out.astype(out_ref.dtype)


def _z_kernel(z_ref, x_ref, xcT_ref, gz_ref, bz_ref, w_ref, sqb_ref, upb_ref,
              out_ref):
    tr, tc, cz = z_ref.shape                                  # tile dims (static)
    p = tr * tc

    gz = gz_ref[...].astype(jnp.float32)                      # (1, C_z)
    bz = bz_ref[...].astype(jnp.float32)                      # (1, C_z) = beta_z + linear_b
    w = w_ref[...].astype(jnp.float32)                        # (NB, C_z)
    sqb = sqb_ref[...]                                        # (NB, 1)
    upb = upb_ref[...]                                        # (NB, 1)

    # ---- pairwise squared distances, lane-dense (tr, tc) --------------------
    # Row coords sliced from the VMEM-resident (N, 3) array; column coords
    # arrive transposed (3, tc) via the outer-axis BlockSpec.  Exact
    # subtract-square-sum (no |xi|^2+|xj|^2-2xi.xj cancellation).
    i = pl.program_id(1)                                      # row-block index
    r0 = pl.multiple_of(i * tr, 8)
    xr = x_ref[pl.ds(r0, tr), :].astype(jnp.float32)          # (tr, 3)
    xc = xcT_ref[...].astype(jnp.float32)                     # (3, tc)
    d2 = jnp.zeros((tr, tc), jnp.float32)
    for k in range(3):
        diff = xr[:, k:k + 1] - xc[k:k + 1, :]                # (tr, tc)
        d2 = d2 + diff * diff

    # ---- tile-wide LayerNorm over C_z (flattened, no per-row loop) ----------
    zf = z_ref[...].reshape(p, cz).astype(jnp.float32)        # free leading-dim collapse
    mu = jnp.mean(zf, axis=-1, keepdims=True)
    var = jnp.mean((zf - mu) ** 2, axis=-1, keepdims=True)
    z_ln = (zf - mu) * jax.lax.rsqrt(var + EPS) * gz + bz     # (P, C_z)

    # ---- distogram embedding: one lane-dense one-hot + one MXU matmul -------
    d2f = d2.reshape(1, p)                                    # (1, P) lane vector
    ohT = ((d2f > sqb) & (d2f < upb)).astype(jnp.float32)     # (NB, P) lane-dense
    # emb = ohT.T @ W  (contraction on the sublane dim of both -> MXU)
    emb = jax.lax.dot_general(ohT, w, (((0,), (0,)), ((), ())),
                              preferred_element_type=jnp.float32)  # (P, C_z)

    out_ref[...] = (z_ln + emb).reshape(tr, tc, cz).astype(out_ref.dtype)


# ----------------------------- tiling helpers --------------------------------
def _pick_m_tile(n):
    for t in (128, 64, 32, 16, 8):
        if n % t == 0 and n // t >= 2:
            return t
    return n


def _pick_z_tiles(n):
    # Column tile: lane-aligned multiple of 128 dividing n, else the full axis.
    col = n
    for c in (512, 384, 256, 128):
        if n % c == 0:
            col = c
            break
    # Row tile: 16 keeps the double-buffered in+out f32 blocks comfortably
    # under v7x's 64 MiB/core VMEM for col_tile<=512, C_z<=128 while still
    # moving multi-MB per grid step (v5e/v6e can override with bigger tiles).
    row = n
    for r in (16, 8):
        if n % r == 0:
            row = r
            break
    return row, col


def _default_vmem_limit():
    """Generation-aware scoped-VMEM budget: ~48 MiB on v7x (64 MiB/core),
    ~96 MiB on v5e/v6e (128 MiB physical)."""
    cap = 64 * 1024 * 1024
    try:
        cap = int(pltpu.get_tpu_info().vmem_capacity_bytes)
    except Exception:
        pass  # fall back to the v7x-safe value
    return max(32 * 1024 * 1024, min(96 * 1024 * 1024, (3 * cap) // 4))


# ----------------------------- wrapper ----------------------------------------
def recycling_embedder(m, z, x, params, *, min_bin, max_bin, no_bins,
                       inf=1e8, row_tile=None, col_tile=None, m_tile=None,
                       vmem_limit_bytes=None):
    """Pallas implementation of RecyclingEmbedder.forward (inplace_safe=False)."""
    gm, bm = params["gamma_m"], params["beta_m"]
    gz, bz = params["gamma_z"], params["beta_z"]
    w, lb = params["linear_w"], params["linear_b"]            # w: (no_bins, C_z)

    n_res, c_m = m.shape
    c_z = z.shape[-1]

    if m_tile is None:
        m_tile = _pick_m_tile(n_res)
    auto_row, auto_col = _pick_z_tiles(n_res)
    row_tile = auto_row if row_tile is None else row_tile
    col_tile = auto_col if col_tile is None else col_tile
    if vmem_limit_bytes is None:
        vmem_limit_bytes = _default_vmem_limit()

    # TODO(synk): pad + mask ragged n_res instead of asserting divisibility.
    assert n_res % m_tile == 0
    assert n_res % row_tile == 0 and n_res % col_tile == 0
    assert row_tile == n_res or row_tile % 8 == 0
    assert col_tile % 128 == 0 or col_tile == n_res

    # Distogram bin edges (compile-time constants -> tiny 2-D inputs, bins on
    # the sublane axis so in-kernel comparisons are lane-dense over pairs).
    bins = np.linspace(min_bin, max_bin, no_bins, dtype=np.float32)
    sqb_np = bins ** 2
    upb_np = np.concatenate([sqb_np[1:], np.array([inf], dtype=np.float32)])
    sqb = jnp.asarray(sqb_np)[:, None]                        # (NB, 1)
    upb = jnp.asarray(upb_np)[:, None]                        # (NB, 1)

    gm2, bm2 = gm[None, :], bm[None, :]                       # (1, C_m)
    gz2 = gz[None, :]                                         # (1, C_z)
    bzlb2 = (bz + lb)[None, :]                                # (1, C_z): beta_z + linear_b
    xT = jnp.transpose(x)                                     # (3, N_res)

    # ---- m update: row-tiled LayerNorm(C_m) ---------------------------------
    m_update = pl.pallas_call(
        _m_kernel,
        out_shape=jax.ShapeDtypeStruct((n_res, c_m), m.dtype),
        grid=(n_res // m_tile,),
        in_specs=[pl.BlockSpec((m_tile, c_m), lambda i: (i, 0)),
                  pl.BlockSpec((1, c_m), lambda i: (0, 0)),
                  pl.BlockSpec((1, c_m), lambda i: (0, 0))],
        out_specs=pl.BlockSpec((m_tile, c_m), lambda i: (i, 0)),
        compiler_params=pltpu.CompilerParams(
            dimension_semantics=("parallel",)),
    )(m, gm2, bm2)

    # ---- z update: LayerNorm(C_z) + distogram embedding, 2-D tiled ----------
    # Grid axis 0 = column blocks (outer), axis 1 = row blocks (inner): the
    # transposed coord block only changes on the outer axis, and x is fully
    # resident, so only the z tile moves per grid step.
    grid = (n_res // col_tile, n_res // row_tile)
    z_update = pl.pallas_call(
        _z_kernel,
        out_shape=jax.ShapeDtypeStruct((n_res, n_res, c_z), z.dtype),
        grid=grid,
        in_specs=[
            pl.BlockSpec((row_tile, col_tile, c_z), lambda j, i: (i, j, 0)),  # z tile
            pl.BlockSpec((n_res, 3), lambda j, i: (0, 0)),                    # x (resident)
            pl.BlockSpec((3, col_tile), lambda j, i: (0, j)),                 # x cols (T)
            pl.BlockSpec((1, c_z), lambda j, i: (0, 0)),                      # gamma_z
            pl.BlockSpec((1, c_z), lambda j, i: (0, 0)),                      # beta_z + lin_b
            pl.BlockSpec((no_bins, c_z), lambda j, i: (0, 0)),                # linear W
            pl.BlockSpec((no_bins, 1), lambda j, i: (0, 0)),                  # sq bins
            pl.BlockSpec((no_bins, 1), lambda j, i: (0, 0)),                  # upper edges
        ],
        out_specs=pl.BlockSpec((row_tile, col_tile, c_z), lambda j, i: (i, j, 0)),
        compiler_params=pltpu.CompilerParams(
            dimension_semantics=("parallel", "parallel"),
            vmem_limit_bytes=vmem_limit_bytes),
    )(z, x, xT, gz2, bzlb2, w, sqb, upb)

    return m_update, z_update


# ---------------------------- pure-JAX reference ------------------------------
def reference(m, z, x, params, *, min_bin, max_bin, no_bins, inf=1e8):
    def ln(t, g, b):
        mu = t.mean(-1, keepdims=True)
        var = ((t - mu) ** 2).mean(-1, keepdims=True)
        return (t - mu) / jnp.sqrt(var + EPS) * g + b

    m_u = ln(m, params["gamma_m"], params["beta_m"])
    z_u = ln(z, params["gamma_z"], params["beta_z"])
    bins = jnp.linspace(min_bin, max_bin, no_bins, dtype=x.dtype)
    sqb = bins ** 2
    upper = jnp.concatenate([sqb[1:], jnp.array([inf], dtype=x.dtype)])
    diff = x[:, None, :] - x[None, :, :]
    d = jnp.sum(diff * diff, axis=-1, keepdims=True)
    oh = ((d > sqb) & (d < upper)).astype(x.dtype)
    demb = oh @ params["linear_w"] + params["linear_b"]
    return m_u, z_u + demb


if __name__ == "__main__":
    # Small, module-consistent shapes (correctness only; tune on production
    # shapes C_z=128, N>=256).
    N_RES, C_M, C_Z, NO_BINS = 256, 32, 16, 8
    MIN_BIN, MAX_BIN = 2.0, 20.0

    key = jax.random.PRNGKey(0)
    k_m, k_z, k_x, k1, k2, k3, k4, k5, k6 = jax.random.split(key, 9)

    m = jax.random.normal(k_m, (N_RES, C_M), dtype=jnp.float32)
    z = jax.random.normal(k_z, (N_RES, N_RES, C_Z), dtype=jnp.float32)
    # Coordinates quantized to multiples of 0.5 so squared distances are exact
    # in f32 -> distogram binning is deterministic vs. the reference.
    x = 0.5 * jnp.round(8.0 * jax.random.normal(k_x, (N_RES, 3), dtype=jnp.float32))

    params = {
        "gamma_m": 1.0 + 0.1 * jax.random.normal(k1, (C_M,), dtype=jnp.float32),
        "beta_m": 0.1 * jax.random.normal(k2, (C_M,), dtype=jnp.float32),
        "gamma_z": 1.0 + 0.1 * jax.random.normal(k3, (C_Z,), dtype=jnp.float32),
        "beta_z": 0.1 * jax.random.normal(k4, (C_Z,), dtype=jnp.float32),
        "linear_w": 0.2 * jax.random.normal(k5, (NO_BINS, C_Z), dtype=jnp.float32),
        "linear_b": 0.1 * jax.random.normal(k6, (C_Z,), dtype=jnp.float32),
    }

    m_out, z_out = recycling_embedder(
        m, z, x, params, min_bin=MIN_BIN, max_bin=MAX_BIN, no_bins=NO_BINS,
        row_tile=16, col_tile=128)        # grid = (2, 16): exercises 2-D tiling
    jax.block_until_ready((m_out, z_out))

    m_ref, z_ref = reference(m, z, x, params, min_bin=MIN_BIN, max_bin=MAX_BIN,
                             no_bins=NO_BINS)
    np.testing.assert_allclose(np.asarray(m_out), np.asarray(m_ref),
                               rtol=2e-4, atol=2e-4)
    np.testing.assert_allclose(np.asarray(z_out), np.asarray(z_ref),
                               rtol=2e-4, atol=2e-4)
    print("KERNEL_OK")
</pallas_src>

<mosaic_0001>
module attributes {stable_mosaic.version = 11 : i64} {
  func.func @_m_kernel(%arg0: i32, %arg1: memref<128x32xf32, #tpu.memory_space<vmem>>, %arg2: memref<1x32xf32, #tpu.memory_space<vmem>>, %arg3: memref<1x32xf32, #tpu.memory_space<vmem>>, %arg4: memref<128x32xf32, #tpu.memory_space<vmem>>) attributes {dimension_semantics = [#tpu.dimension_semantics<parallel>], iteration_bounds = array<i64: 2>, scalar_prefetch = 0 : i64, scratch_operands = 0 : i64, tpu.core_type = #tpu.core_type<tc>, window_params = [{transform_indices = @transform_0, window_bounds = array<i64: 128, 32>}, {pipeline_mode = #tpu.pipeline_mode<synchronous>, transform_indices = @transform_1, window_bounds = array<i64: 1, 32>}, {pipeline_mode = #tpu.pipeline_mode<synchronous>, transform_indices = @transform_2, window_bounds = array<i64: 1, 32>}, {transform_indices = @transform_3, window_bounds = array<i64: 128, 32>}]} {
    %c0 = arith.constant 0 : index
    %c0_0 = arith.constant 0 : index
    %0 = vector.load %arg1[%c0, %c0_0] : memref<128x32xf32, #tpu.memory_space<vmem>>, vector<128x32xf32>
    %cst = arith.constant dense<0.000000e+00> : vector<128xf32>
    %1 = vector.multi_reduction <add>, %0, %cst [1] : vector<128x32xf32> to vector<128xf32>
    %2 = vector.shape_cast %1 : vector<128xf32> to vector<128x1xf32>
    %cst_1 = arith.constant 3.200000e+01 : f32
    %3 = vector.broadcast %cst_1 : f32 to vector<128x1xf32>
    %4 = arith.divf %2, %3 : vector<128x1xf32>
    %5 = vector.broadcast %4 : vector<128x1xf32> to vector<128x32xf32>
    %6 = arith.subf %0, %5 : vector<128x32xf32>
    %7 = arith.mulf %6, %6 : vector<128x32xf32>
    %cst_2 = arith.constant dense<0.000000e+00> : vector<128xf32>
    %8 = vector.multi_reduction <add>, %7, %cst_2 [1] : vector<128x32xf32> to vector<128xf32>
    %9 = vector.shape_cast %8 : vector<128xf32> to vector<128x1xf32>
    %cst_3 = arith.constant 3.200000e+01 : f32
    %10 = vector.broadcast %cst_3 : f32 to vector<128x1xf32>
    %11 = arith.divf %9, %10 : vector<128x1xf32>
    %12 = vector.broadcast %4 : vector<128x1xf32> to vector<128x32xf32>
    %13 = arith.subf %0, %12 : vector<128x32xf32>
    %cst_4 = arith.constant 9.99999974E-6 : f32
    %14 = vector.broadcast %cst_4 : f32 to vector<128x1xf32>
    %15 = arith.addf %11, %14 : vector<128x1xf32>
    %16 = math.rsqrt %15 : vector<128x1xf32>
    %17 = vector.broadcast %16 : vector<128x1xf32> to vector<128x32xf32>
    %18 = arith.mulf %13, %17 : vector<128x32xf32>
    %c0_5 = arith.constant 0 : index
    %c0_6 = arith.constant 0 : index
    %19 = vector.load %arg2[%c0_5, %c0_6] : memref<1x32xf32, #tpu.memory_space<vmem>>, vector<1x32xf32>
    %20 = vector.broadcast %19 : vector<1x32xf32> to vector<128x32xf32>
    %21 = arith.mulf %18, %20 : vector<128x32xf32>
    %c0_7 = arith.constant 0 : index
    %c0_8 = arith.constant 0 : index
    %22 = vector.load %arg3[%c0_7, %c0_8] : memref<1x32xf32, #tpu.memory_space<vmem>>, vector<1x32xf32>
    %23 = vector.broadcast %22 : vector<1x32xf32> to vector<128x32xf32>
    %24 = arith.addf %21, %23 : vector<128x32xf32>
    %c0_9 = arith.constant 0 : index
    %c0_10 = arith.constant 0 : index
    %25 = vector.load %arg4[%c0_9, %c0_10] : memref<128x32xf32, #tpu.memory_space<vmem>>, vector<128x32xf32>
    tpu.vector_store %arg4[%c0_9, %c0_10], %24 {strides = array<i32>} : memref<128x32xf32, #tpu.memory_space<vmem>>, vector<128x32xf32>,
    return
  }
  func.func @transform_0(%arg0: i32) -> (i32, i32) {
    %c0_i32 = arith.constant 0 : i32
    %c0_i32_0 = arith.constant 0 : i32
    return %arg0, %c0_i32 : i32, i32
  }
  func.func @transform_1(%arg0: i32) -> (i32, i32) {
    %c0_i32 = arith.constant 0 : i32
    %c0_i32_0 = arith.constant 0 : i32
    %c0_i32_1 = arith.constant 0 : i32
    return %c0_i32, %c0_i32_0 : i32, i32
  }
  func.func @transform_2(%arg0: i32) -> (i32, i32) {
    %c0_i32 = arith.constant 0 : i32
    %c0_i32_0 = arith.constant 0 : i32
    %c0_i32_1 = arith.constant 0 : i32
    return %c0_i32, %c0_i32_0 : i32, i32
  }
  func.func @transform_3(%arg0: i32) -> (i32, i32) {
    %c0_i32 = arith.constant 0 : i32
    %c0_i32_0 = arith.constant 0 : i32
    return %arg0, %c0_i32 : i32, i32
  }
}

</mosaic_0001>

<llo_original>
// kernel: tpu_custom_call.1
$region0: #{tpu_custom_call.1}
  #allocation0 [shape = 'u32[]', space=smem, size = 0x4, offset = 0x4, fixed_abs, tag = 'smem constant byte address 0x4 - core index']
  #allocation1 [shape = 'u32[144,128]{1,0:T(1,128)}', space=vmem, size = 0x12000, scoped, tag = 'internal scratch']
  %s0 = inlined_call_operand.vmem [shape: f32[256,32], index: 0, kind: input, shape index: {}]
  %s1 = inlined_call_operand.vmem [shape: f32[1,32], index: 1, kind: input, shape index: {}]
  %s2 = inlined_call_operand.vmem [shape: f32[1,32], index: 2, kind: input, shape index: {}]
  %s3 = inlined_call_operand.vmem [shape: f32[256,32], index: 3, kind: output, shape index: {}]
  %s4 = sld [smem:[#allocation0]]
  $region45: #{tpu_custom_call.1} parent=0
    _
  %s6 = ssub.s32 1, %s4
  %s7 = scalar_select 0, %s6, %s4
  loop: start=0, step=1, limit=4
  $region2: #{tpu_custom_call.1} parent=0 // loop_pre_header
    _
  $region3: #{tpu_custom_call.1} parent=0 // loop_header
    %s9 = sphi 0, %s13
    %p10 = scmp.ge.s32.totalorder %s9, 4
    %s19 = sphi 0, %s21
    %s22 = sphi 0, %s19
    %s23 = sphi 0, %s22
    %s39 = sphi 0, %s23
    %s43 = sphi 0, %s43
    %s45 = sphi 0, %s43
    %s46 = sphi 0, %s45
    %s60 = sphi 0, %s46
    %s64 = sphi 0, %s64
    %s66 = sphi 0, %s64
    %s67 = sphi 0, %s66
    %s81 = sphi 0, %s67
    %s87 = sphi 0, %s89
    %s90 = sphi 0, %s87
    %s91 = sphi 0, %s90
    %s107 = sphi 0, %s91
  $region4: #{tpu_custom_call.1} parent=0 // loop_header_branch
    %12 = sbr.rel (%p10) target = $region8
  $region5: #{tpu_custom_call.1} parent=0 // loop_body
    %s14 = ssub.s32 %s9, 1
    %s15 = ssub.s32 %s9, 2
    %s16 = sadd.s32 %s9, 1
    %s17 = ssub.s32 %s9, %s16
    %p18 = scmp.eq.s32.totalorder %s17, 0
    %s20 = sadd.s32 %s19, 1
    %s21 = scalar_select %p18, %s19, %s20
    %p24 = pneg %p18
    %p25 = scmp.eq.s32.totalorder %s9, 1
    %p26 = por %p24, %p25
    %p27 = scmp.ne.s32.totalorder %s19, %s22
    %p28 = scmp.eq.s32.totalorder %s9, 0
    %p29 = por %p27, %p28
    %p30 = scmp.ne.s32.totalorder %s19, %s22
    %p31 = scmp.eq.s32.totalorder %s14, 1
    %p32 = por %p30, %p31
    %p33 = scmp.ne.s32.totalorder %s22, %s23
    %p34 = scmp.eq.s32.totalorder %s14, 0
    %p35 = por %p33, %p34
    %p36 = scmp.ne.s32.totalorder %s22, %s23
    %p37 = scmp.eq.s32.totalorder %s15, 1
    %p38 = por %p36, %p37
    %p40 = scmp.ne.s32.totalorder %s23, %s39
    %p41 = scmp.eq.s32.totalorder %s15, 0
    %p42 = por %p40, %p41
    %s44 = sadd.s32 %s43, 1
    %p47 = scmp.eq.s32.totalorder %s9, 1
    %p48 = scmp.ne.s32.totalorder %s43, %s45
    %p49 = scmp.eq.s32.totalorder %s9, 0
    %p50 = por %p48, %p49
    %p51 = scmp.ne.s32.totalorder %s43, %s45
    %p52 = scmp.eq.s32.totalorder %s14, 1
    %p53 = por %p51, %p52
    %p54 = scmp.ne.s32.totalorder %s45, %s46
    %p55 = scmp.eq.s32.totalorder %s14, 0
    %p56 = por %p54, %p55
    %p57 = scmp.ne.s32.totalorder %s45, %s46
    %p58 = scmp.eq.s32.totalorder %s15, 1
    %p59 = por %p57, %p58
    %p61 = scmp.ne.s32.totalorder %s46, %s60
    %p62 = scmp.eq.s32.totalorder %s15, 0
    %p63 = por %p61, %p62
    %s65 = sadd.s32 %s64, 1
    %p68 = scmp.eq.s32.totalorder %s9, 1
    %p69 = scmp.ne.s32.totalorder %s64, %s66
    %p70 = scmp.eq.s32.totalorder %s9, 0
    %p71 = por %p69, %p70
    %p72 = scmp.ne.s32.totalorder %s64, %s66
    %p73 = scmp.eq.s32.totalorder %s14, 1
    %p74 = por %p72, %p73
    %p75 = scmp.ne.s32.totalorder %s66, %s67
    %p76 = scmp.eq.s32.totalorder %s14, 0
    %p77 = por %p75, %p76
    %p78 = scmp.ne.s32.totalorder %s66, %s67
    %p79 = scmp.eq.s32.totalorder %s15, 1
    %p80 = por %p78, %p79
    %p82 = scmp.ne.s32.totalorder %s67, %s81
    %p83 = scmp.eq.s32.totalorder %s15, 0
    %p84 = por %p82, %p83
    %s85 = ssub.s32 %s9, %s16
    %p86 = scmp.eq.s32.totalorder %s85, 0
    %s88 = sadd.s32 %s87, 1
    %s89 = scalar_select %p86, %s87, %s88
    %p92 = pneg %p86
    %p93 = scmp.eq.s32.totalorder %s9, 1
    %p94 = por %p92, %p93
    %p95 = scmp.ne.s32.totalorder %s87, %s90
    %p96 = scmp.eq.s32.totalorder %s9, 0
    %p97 = por %p95, %p96
    %p98 = scmp.ne.s32.totalorder %s87, %s90
    %p99 = scmp.eq.s32.totalorder %s14, 1
    %p100 = por %p98, %p99
    %p101 = scmp.ne.s32.totalorder %s90, %s91
    %p102 = scmp.eq.s32.totalorder %s14, 0
    %p103 = por %p101, %p102
    %p104 = scmp.ne.s32.totalorder %s90, %s91
    %p105 = scmp.eq.s32.totalorder %s15, 1
    %p106 = por %p104, %p105
    %p108 = scmp.ne.s32.totalorder %s91, %s107
    %p109 = scmp.eq.s32.totalorder %s15, 0
    %p110 = por %p108, %p109
    %p111 = scmp.le.s32.totalorder 1, %s9
    %p112 = scmp.lt.s32.totalorder %s9, 3
    %p113 = pnand %p111, %p112
    %p114 = pneg %p113
    // Predicated region
    $region9: #{tpu_custom_call.1} parent=5 // pred_check
      _
    $region10: #{tpu_custom_call.1} parent=5 // pred_check_branch
      %116 = sbr.rel (%p113) target = $region12
    $region11: #{tpu_custom_call.1} parent=5 // pred_region
      %s117 = ssub.s32 %s9, 1
      // Predicated region
      $region13: #{tpu_custom_call.1} parent=11 // pred_check
        %p118 = pneg %p56
      $region14: #{tpu_custom_call.1} parent=11 // pred_check_branch
        %120 = sbr.rel (%p118) target = $region16
      $region15: #{tpu_custom_call.1} parent=11 // pred_region
        _
      $region16: #{tpu_custom_call.1} parent=11 // pred_fallthru
        _
      // Predicated region
      $region17: #{tpu_custom_call.1} parent=11 // pred_check
        %p121 = pneg %p77
      $region18: #{tpu_custom_call.1} parent=11 // pred_check_branch
        %123 = sbr.rel (%p121) target = $region20
      $region19: #{tpu_custom_call.1} parent=11 // pred_region
        _
      $region20: #{tpu_custom_call.1} parent=11 // pred_fallthru
        _
    $region12: #{tpu_custom_call.1} parent=5 // pred_fallthru
      _
    %p124 = scmp.lt.s32.totalorder %s9, 2
    // Predicated region
    $region21: #{tpu_custom_call.1} parent=5 // pred_check
      %p125 = pneg %p124
    $region22: #{tpu_custom_call.1} parent=5 // pred_check_branch
      %127 = sbr.rel (%p125) target = $region24
    $region23: #{tpu_custom_call.1} parent=5 // pred_region
      // Predicated region
      $region25: #{tpu_custom_call.1} parent=23 // pred_check
        %p128 = pneg %p29
      $region26: #{tpu_custom_call.1} parent=23 // pred_check_branch
        %130 = sbr.rel (%p128) target = $region28
      $region27: #{tpu_custom_call.1} parent=23 // pred_region
        %s131 = smul.u32 16, %s9
        %p132 = scmp.lt.s32.totalorder %s131, 31
        %s133 = scalar_select %p132, %s131, 31
        %s134 = smul.addr %s133, 8
        %s135 = scalar_lea.vmem %s0, %s134
        %s136 = smul.u32 16, %s9
      $region28: #{tpu_custom_call.1} parent=23 // pred_fallthru
        _
    $region24: #{tpu_custom_call.1} parent=5 // pred_fallthru
      _
    %p137 = scmp.le.s32.totalorder 1, %s9
    %p138 = scmp.lt.s32.totalorder %s9, 3
    %p139 = pnand %p137, %p138
    %p140 = pneg %p139
    // Predicated region
    $region29: #{tpu_custom_call.1} parent=5 // pred_check
      _
    $region30: #{tpu_custom_call.1} parent=5 // pred_check_branch
      %142 = sbr.rel (%p139) target = $region32
    $region31: #{tpu_custom_call.1} parent=5 // pred_region
      %s143 = ssub.s32 %s9, 1
      %s144 = smul.u32 16, %s14
      %p145 = scmp.lt.s32.totalorder %s144, 31
      %s146 = scalar_select %p145, %s144, 31
      %s147 = smul.addr %s146, 8
      %s148 = scalar_lea.vmem %s0, %s147
      %p149 = pneg %p35
      %p150 = pneg %p32
      %p151 = pneg %p56
      %p152 = pneg %p53
      %p153 = pneg %p77
      %p154 = pneg %p74
      %p155 = pneg %p103
      %p156 = pneg %p100
      %s157 = smul.u32 16, %s14
      %p158 = scmp.lt.s32.totalorder %s157, 31
      %s159 = scalar_select %p158, %s157, 31
      %s160 = smul.addr %s159, 8
      %s161 = scalar_lea.vmem %s3, %s160
      %s162 = smul.u32 16, %s14
      %p163 = scmp.lt.s32.totalorder %s162, 31
      %s164 = scalar_select %p163, %s162, 31
      %s165 = smul.addr %s164, 8
      %s166 = scalar_lea.vmem %s0, %s165
      %s167 = smul.u32 16, %s14
      %s168 = smul.u32 16, %s14
      %p169 = scmp.lt.s32.totalorder %s168, 31
      %s170 = scalar_select %p169, %s168, 31
      %s171 = smul.addr %s170, 8
      %s172 = scalar_lea.vmem %s3, %s171
      %s173 = smul.u32 16, %s14
      %v174 = vld [vmem:[%s166] sm:$0xff]
      %v175 = vld [vmem:[%s166 + $0x8] sm:$0xff]
      %v176 = vld [vmem:[%s166 + $0x10] sm:$0xff]
      %v177 = vld [vmem:[%s166 + $0x18] sm:$0xff]
      %v178 = vld [vmem:[%s166 + $0x20] sm:$0xff]
      %v179 = vld [vmem:[%s166 + $0x28] sm:$0xff]
      %v180 = vld [vmem:[%s166 + $0x30] sm:$0xff]
      %v181 = vld [vmem:[%s166 + $0x38] sm:$0xff]
      %v182 = vld [vmem:[%s166 + $0x40] sm:$0xff]
      %v183 = vld [vmem:[%s166 + $0x48] sm:$0xff]
      %v184 = vld [vmem:[%s166 + $0x50] sm:$0xff]
      %v185 = vld [vmem:[%s166 + $0x58] sm:$0xff]
      %v186 = vld [vmem:[%s166 + $0x60] sm:$0xff]
      %v187 = vld [vmem:[%s166 + $0x68] sm:$0xff]
      %v188 = vld [vmem:[%s166 + $0x70] sm:$0xff]
      %v189 = vld [vmem:[%s166 + $0x78] sm:$0xff]
      %vm190 = vcmask 261120
      %v191 = vsel %vm190, %v174, 0.0
      %192 = vadd.xlane.f32.xlu0 %v191
      %v193 = vpop.xlane.xlu0 %192
      %v194 = vsel %vm190, %v175, 0.0
      %195 = vadd.xlane.f32.xlu0 %v194
      %v196 = vpop.xlane.xlu0 %195
      %v197 = vsel %vm190, %v176, 0.0
      %198 = vadd.xlane.f32.xlu0 %v197
      %v199 = vpop.xlane.xlu0 %198
      %v200 = vsel %vm190, %v177, 0.0
      %201 = vadd.xlane.f32.xlu0 %v200
      %v202 = vpop.xlane.xlu0 %201
      %v203 = vsel %vm190, %v178, 0.0
      %204 = vadd.xlane.f32.xlu0 %v203
      %v205 = vpop.xlane.xlu0 %204
      %v206 = vsel %vm190, %v179, 0.0
      %207 = vadd.xlane.f32.xlu0 %v206
      %v208 = vpop.xlane.xlu0 %207
      %v209 = vsel %vm190, %v180, 0.0
      %210 = vadd.xlane.f32.xlu0 %v209
      %v211 = vpop.xlane.xlu0 %210
      %v212 = vsel %vm190, %v181, 0.0
      %213 = vadd.xlane.f32.xlu0 %v212
      %v214 = vpop.xlane.xlu0 %213
      %v215 = vsel %vm190, %v182, 0.0
      %216 = vadd.xlane.f32.xlu0 %v215
      %v217 = vpop.xlane.xlu0 %216
      %v218 = vsel %vm190, %v183, 0.0
      %219 = vadd.xlane.f32.xlu0 %v218
      %v220 = vpop.xlane.xlu0 %219
      %v221 = vsel %vm190, %v184, 0.0
      %222 = vadd.xlane.f32.xlu0 %v221
      %v223 = vpop.xlane.xlu0 %222
      %v224 = vsel %vm190, %v185, 0.0
      %225 = vadd.xlane.f32.xlu0 %v224
      %v226 = vpop.xlane.xlu0 %225
      %v227 = vsel %vm190, %v186, 0.0
      %228 = vadd.xlane.f32.xlu0 %v227
      %v229 = vpop.xlane.xlu0 %228
      %v230 = vsel %vm190, %v187, 0.0
      %231 = vadd.xlane.f32.xlu0 %v230
      %v232 = vpop.xlane.xlu0 %231
      %v233 = vsel %vm190, %v188, 0.0
      %234 = vadd.xlane.f32.xlu0 %v233
      %v235 = vpop.xlane.xlu0 %234
      %v236 = vsel %vm190, %v189, 0.0
      %237 = vadd.xlane.f32.xlu0 %v236
      %v238 = vpop.xlane.xlu0 %237
      %v239 = vrcp.pop 32.0
      %v240 = vmul.f32 %v193, %v239
      %v241 = vmul.f32 %v196, %v239
      %v242 = vmul.f32 %v199, %v239
      %v243 = vmul.f32 %v202, %v239
      %v244 = vmul.f32 %v205, %v239
      %v245 = vmul.f32 %v208, %v239
      %v246 = vmul.f32 %v211, %v239
      %v247 = vmul.f32 %v214, %v239
      %v248 = vmul.f32 %v217, %v239
      %v249 = vmul.f32 %v220, %v239
      %v250 = vmul.f32 %v223, %v239
      %v251 = vmul.f32 %v226, %v239
      %v252 = vmul.f32 %v229, %v239
      %v253 = vmul.f32 %v232, %v239
      %v254 = vmul.f32 %v235, %v239
      %v255 = vmul.f32 %v238, %v239
      %v256 = vsub.f32 %v174, %v240
      %v257 = vsub.f32 %v175, %v241
      %v258 = vsub.f32 %v176, %v242
      %v259 = vsub.f32 %v177, %v243
      %v260 = vsub.f32 %v178, %v244
      %v261 = vsub.f32 %v179, %v245
      %v262 = vsub.f32 %v180, %v246
      %v263 = vsub.f32 %v181, %v247
      %v264 = vsub.f32 %v182, %v248
      %v265 = vsub.f32 %v183, %v249
      %v266 = vsub.f32 %v184, %v250
      %v267 = vsub.f32 %v185, %v251
      %v268 = vsub.f32 %v186, %v252
      %v269 = vsub.f32 %v187, %v253
      %v270 = vsub.f32 %v188, %v254
      %v271 = vsub.f32 %v189, %v255
      %v272 = vmul.f32 %v256, %v256
      %v273 = vmul.f32 %v257, %v257
      %v274 = vmul.f32 %v258, %v258
      %v275 = vmul.f32 %v259, %v259
      %v276 = vmul.f32 %v260, %v260
      %v277 = vmul.f32 %v261, %v261
      %v278 = vmul.f32 %v262, %v262
      %v279 = vmul.f32 %v263, %v263
      %v280 = vmul.f32 %v264, %v264
      %v281 = vmul.f32 %v265, %v265
      %v282 = vmul.f32 %v266, %v266
      %v283 = vmul.f32 %v267, %v267
      %v284 = vmul.f32 %v268, %v268
      %v285 = vmul.f32 %v269, %v269
      %v286 = vmul.f32 %v270, %v270
      %v287 = vmul.f32 %v271, %v271
      %v288 = vsel %vm190, %v272, 0.0
      %289 = vadd.xlane.f32.xlu0 %v288
      %v290 = vpop.xlane.xlu0 %289
      %v291 = vsel %vm190, %v273, 0.0
      %292 = vadd.xlane.f32.xlu0 %v291
      %v293 = vpop.xlane.xlu0 %292
      %v294 = vsel %vm190, %v274, 0.0
      %295 = vadd.xlane.f32.xlu0 %v294
      %v296 = vpop.xlane.xlu0 %295
      %v297 = vsel %vm190, %v275, 0.0
      %298 = vadd.xlane.f32.xlu0 %v297
      %v299 = vpop.xlane.xlu0 %298
      %v300 = vsel %vm190, %v276, 0.0
      %301 = vadd.xlane.f32.xlu0 %v300
      %v302 = vpop.xlane.xlu0 %301
      %v303 = vsel %vm190, %v277, 0.0
      %304 = vadd.xlane.f32.xlu0 %v303
      %v305 = vpop.xlane.xlu0 %304
      %v306 = vsel %vm190, %v278, 0.0
      %307 = vadd.xlane.f32.xlu0 %v306
      %v308 = vpop.xlane.xlu0 %307
      %v309 = vsel %vm190, %v279, 0.0
      %310 = vadd.xlane.f32.xlu0 %v309
      %v311 = vpop.xlane.xlu0 %310
      %v312 = vsel %vm190, %v280, 0.0
      %313 = vadd.xlane.f32.xlu0 %v312
      %v314 = vpop.xlane.xlu0 %313
      %v315 = vsel %vm190, %v281, 0.0
      %316 = vadd.xlane.f32.xlu0 %v315
      %v317 = vpop.xlane.xlu0 %316
      %v318 = vsel %vm190, %v282, 0.0
      %319 = vadd.xlane.f32.xlu0 %v318
      %v320 = vpop.xlane.xlu0 %319
      %v321 = vsel %vm190, %v283, 0.0
      %322 = vadd.xlane.f32.xlu0 %v321
      %v323 = vpop.xlane.xlu0 %322
      %v324 = vsel %vm190, %v284, 0.0
      %325 = vadd.xlane.f32.xlu0 %v324
      %v326 = vpop.xlane.xlu0 %325
      %v327 = vsel %vm190, %v285, 0.0
      %328 = vadd.xlane.f32.xlu0 %v327
      %v329 = vpop.xlane.xlu0 %328
      %v330 = vsel %vm190, %v286, 0.0
      %331 = vadd.xlane.f32.xlu0 %v330
      %v332 = vpop.xlane.xlu0 %331
      %v333 = vsel %vm190, %v287, 0.0
      %334 = vadd.xlane.f32.xlu0 %v333
      %v335 = vpop.xlane.xlu0 %334
      %v336 = vmul.f32 %v290, %v239
      %v337 = vmul.f32 %v293, %v239
      %v338 = vmul.f32 %v296, %v239
      %v339 = vmul.f32 %v299, %v239
      %v340 = vmul.f32 %v302, %v239
      %v341 = vmul.f32 %v305, %v239
      %v342 = vmul.f32 %v308, %v239
      %v343 = vmul.f32 %v311, %v239
      %v344 = vmul.f32 %v314, %v239
      %v345 = vmul.f32 %v317, %v239
      %v346 = vmul.f32 %v320, %v239
      %v347 = vmul.f32 %v323, %v239
      %v348 = vmul.f32 %v326, %v239
      %v349 = vmul.f32 %v329, %v239
      %v350 = vmul.f32 %v332, %v239
      %v351 = vmul.f32 %v335, %v239
      %v352 = vadd.f32 %v336, 1e-05
      %v353 = vadd.f32 %v337, 1e-05
      %v354 = vadd.f32 %v338, 1e-05
      %v355 = vadd.f32 %v339, 1e-05
      %v356 = vadd.f32 %v340, 1e-05
      %v357 = vadd.f32 %v341, 1e-05
      %v358 = vadd.f32 %v342, 1e-05
      %v359 = vadd.f32 %v343, 1e-05
      %v360 = vadd.f32 %v344, 1e-05
      %v361 = vadd.f32 %v345, 1e-05
      %v362 = vadd.f32 %v346, 1e-05
      %v363 = vadd.f32 %v347, 1e-05
      %v364 = vadd.f32 %v348, 1e-05
      %v365 = vadd.f32 %v349, 1e-05
      %v366 = vadd.f32 %v350, 1e-05
      %v367 = vadd.f32 %v351, 1e-05
      %v368 = vrsqrt.pop %v352
      %v369 = vrsqrt.pop %v353
      %v370 = vrsqrt.pop %v354
      %v371 = vrsqrt.pop %v355
      %v372 = vrsqrt.pop %v356
      %v373 = vrsqrt.pop %v357
      %v374 = vrsqrt.pop %v358
      %v375 = vrsqrt.pop %v359
      %v376 = vrsqrt.pop %v360
      %v377 = vrsqrt.pop %v361
      %v378 = vrsqrt.pop %v362
      %v379 = vrsqrt.pop %v363
      %v380 = vrsqrt.pop %v364
      %v381 = vrsqrt.pop %v365
      %v382 = vrsqrt.pop %v366
      %v383 = vrsqrt.pop %v367
      %v384 = vmul.f32 %v256, %v368
      %v385 = vmul.f32 %v257, %v369
      %v386 = vmul.f32 %v258, %v370
      %v387 = vmul.f32 %v259, %v371
      %v388 = vmul.f32 %v260, %v372
      %v389 = vmul.f32 %v261, %v373
      %v390 = vmul.f32 %v262, %v374
      %v391 = vmul.f32 %v263, %v375
      %v392 = vmul.f32 %v264, %v376
      %v393 = vmul.f32 %v265, %v377
      %v394 = vmul.f32 %v266, %v378
      %v395 = vmul.f32 %v267, %v379
      %v396 = vmul.f32 %v268, %v380
      %v397 = vmul.f32 %v269, %v381
      %v398 = vmul.f32 %v270, %v382
      %v399 = vmul.f32 %v271, %v383
      %v400 = vld [vmem:[%s1] sm:$0x1]
      %v402 = vlaneseq
      %v403 = vshrl.u32 %v402, 7
      %v404 = vsub.s32 0, %v403
      %v405 = vrot.slane %v400, %v404
      %v407 = vmul.f32 %v384, %v405
      %v408 = vmul.f32 %v385, %v405
      %v409 = vmul.f32 %v386, %v405
      %v410 = vmul.f32 %v387, %v405
      %v411 = vmul.f32 %v388, %v405
      %v412 = vmul.f32 %v389, %v405
      %v413 = vmul.f32 %v390, %v405
      %v414 = vmul.f32 %v391, %v405
      %v415 = vmul.f32 %v392, %v405
      %v416 = vmul.f32 %v393, %v405
      %v417 = vmul.f32 %v394, %v405
      %v418 = vmul.f32 %v395, %v405
      %v419 = vmul.f32 %v396, %v405
      %v420 = vmul.f32 %v397, %v405
      %v421 = vmul.f32 %v398, %v405
      %v422 = vmul.f32 %v399, %v405
      %v423 = vld [vmem:[%s2] sm:$0x1]
      %v425 = vlaneseq
      %v426 = vshrl.u32 %v425, 7
      %v427 = vsub.s32 0, %v426
      %v428 = vrot.slane %v423, %v427
      %v430 = vadd.f32 %v407, %v428
      %v431 = vadd.f32 %v408, %v428
      %v432 = vadd.f32 %v409, %v428
      %v433 = vadd.f32 %v410, %v428
      %v434 = vadd.f32 %v411, %v428
      %v435 = vadd.f32 %v412, %v428
      %v436 = vadd.f32 %v413, %v428
      %v437 = vadd.f32 %v414, %v428
      %v438 = vadd.f32 %v415, %v428
      %v439 = vadd.f32 %v416, %v428
      %v440 = vadd.f32 %v417, %v428
      %v441 = vadd.f32 %v418, %v428
      %v442 = vadd.f32 %v419, %v428
      %v443 = vadd.f32 %v420, %v428
      %v444 = vadd.f32 %v421, %v428
      %v445 = vadd.f32 %v422, %v428
      %446 = vst.msk [vmem:[%s172] sm:$0xff] %vm190, %v430
      %447 = vst.msk [vmem:[%s172 + $0x8] sm:$0xff] %vm190, %v431
      %448 = vst.msk [vmem:[%s172 + $0x10] sm:$0xff] %vm190, %v432
      %449 = vst.msk [vmem:[%s172 + $0x18] sm:$0xff] %vm190, %v433
      %450 = vst.msk [vmem:[%s172 + $0x20] sm:$0xff] %vm190, %v434
      %451 = vst.msk [vmem:[%s172 + $0x28] sm:$0xff] %vm190, %v435
      %452 = vst.msk [vmem:[%s172 + $0x30] sm:$0xff] %vm190, %v436
      %453 = vst.msk [vmem:[%s172 + $0x38] sm:$0xff] %vm190, %v437
      %454 = vst.msk [vmem:[%s172 + $0x40] sm:$0xff] %vm190, %v438
      %455 = vst.msk [vmem:[%s172 + $0x48] sm:$0xff] %vm190, %v439
      %456 = vst.msk [vmem:[%s172 + $0x50] sm:$0xff] %vm190, %v440
      %457 = vst.msk [vmem:[%s172 + $0x58] sm:$0xff] %vm190, %v441
      %458 = vst.msk [vmem:[%s172 + $0x60] sm:$0xff] %vm190, %v442
      %459 = vst.msk [vmem:[%s172 + $0x68] sm:$0xff] %vm190, %v443
      %460 = vst.msk [vmem:[%s172 + $0x70] sm:$0xff] %vm190, %v444
      %461 = vst.msk [vmem:[%s172 + $0x78] sm:$0xff] %vm190, %v445
      %s462 = smul.u32 16, %s14
      %p463 = scmp.lt.s32.totalorder %s462, 31
      %s464 = scalar_select %p463, %s462, 31
      %s465 = smul.addr %s464, 8
      %s466 = scalar_lea.vmem %s3, %s465
      // Predicated region
      $region33: #{tpu_custom_call.1} parent=31 // pred_check
        %p467 = pneg %p100
      $region34: #{tpu_custom_call.1} parent=31 // pred_check_branch
        %469 = sbr.rel (%p467) target = $region36
      $region35: #{tpu_custom_call.1} parent=31 // pred_region
        %s470 = smul.u32 16, %s14
      $region36: #{tpu_custom_call.1} parent=31 // pred_fallthru
        _
    $region32: #{tpu_custom_call.1} parent=5 // pred_fallthru
      _
    %p471 = scmp.le.s32.totalorder 2, %s9
    // Predicated region
    $region37: #{tpu_custom_call.1} parent=5 // pred_check
      %p472 = pneg %p471
    $region38: #{tpu_custom_call.1} parent=5 // pred_check_branch
      %474 = sbr.rel (%p472) target = $region40
    $region39: #{tpu_custom_call.1} parent=5 // pred_region
      %s475 = ssub.s32 %s9, 2
      // Predicated region
      $region41: #{tpu_custom_call.1} parent=39 // pred_check
        %p476 = pneg %p106
      $region42: #{tpu_custom_call.1} parent=39 // pred_check_branch
        %478 = sbr.rel (%p476) target = $region44
      $region43: #{tpu_custom_call.1} parent=39 // pred_region
        %s479 = smul.u32 16, %s15
        %p480 = scmp.lt.s32.totalorder %s479, 31
        %s481 = scalar_select %p480, %s479, 31
        %s482 = smul.addr %s481, 8
        %s483 = scalar_lea.vmem %s3, %s482
      $region44: #{tpu_custom_call.1} parent=39 // pred_fallthru
        _
    $region40: #{tpu_custom_call.1} parent=5 // pred_fallthru
      _
  $region6: #{tpu_custom_call.1} parent=0 // loop_footer
    %s13 = sadd.s32 1, %s9
  $region7: #{tpu_custom_call.1} parent=0 // loop_footer_branch
    %8 = sbr.rel target = $region3
  $region8: #{tpu_custom_call.1} parent=0 // loop_exit
    _

</llo_original>
